<compile_context>
chip_gen: v5e
topology: v5e:2x2
jax: 0.10.0
libtpu: 0.0.40
codegen_flags: <defaults>
</compile_context>

<pallas_src>
import functools

import jax
import jax.numpy as jnp
from jax.experimental import pallas as pl
from jax.experimental.pallas import tpu as pltpu


# Explicit scoped-VMEM limit: > v5e's 16 MiB default, == v7x's 32 MiB default,
# comfortably under every generation's physical VMEM.
VMEM_LIMIT_BYTES = 32 * 1024 * 1024
# Budget used when auto-sizing the batch tile (leave ~10 MiB headroom for
# compiler scratch / relayouts under the 32 MiB limit above).
DATA_VMEM_BUDGET = 22 * 1024 * 1024


def _auto_batch_tile(B, Lp, E2, H, in_bytes, budget_bytes):
    """Largest TB (multiple of 8, <=512, grid >= 2) fitting the VMEM budget."""
    # Weight blocks (constant index_map, still double-buffered by the pipeline).
    fixed = 2 * (E2 * H + H * H + H) * in_bytes
    per_batch = (2 * Lp * E2 * in_bytes      # enc tile (double-buffered)
                 + 2 * H * in_bytes          # s tile   (double-buffered)
                 + 2 * Lp * 4                # out tile (double-buffered, f32)
                 + 4 * Lp * H * 4)           # f32 intermediates (proj/energy)
    avail = max(budget_bytes - fixed, per_batch * 8)
    tb = (avail // max(per_batch, 1)) // 8 * 8
    tb = max(8, min(int(tb), 512))
    # Keep at least 2 grid steps so dimension_semantics=("parallel",) has
    # something to shard across TensorCores (v7x has 2 TCs/chip).
    tb = min(tb, max(8, (B // 2) // 8 * 8))
    return int(tb)


def _attention_kernel(s_ref, enc_ref, w_s_ref, w_e_ref, v_ref, o_ref,
                      *, batch_block, src_len, src_len_padded):
    TB, L, Lp = batch_block, src_len, src_len_padded

    # Projections on the MXU with f32 accumulation (inputs may be bf16).
    s_proj = jnp.dot(s_ref[...], w_s_ref[...],
                     preferred_element_type=jnp.float32)            # (TB, H)
    enc_proj = jnp.dot(enc_ref[...], w_e_ref[...],
                       preferred_element_type=jnp.float32)          # (TB*Lp, H)
    H = s_proj.shape[-1]

    # Lp % 8 == 0 (wrapper pads), so this leading-dim split is a free re-view
    # (no sublane re-tiling / VMEM copy).
    energy = jnp.tanh(enc_proj.reshape(TB, Lp, H) + s_proj[:, None, :])

    # score = energy . v  done as multiply + lane reduce: keeps the result in
    # the (TB, Lp) layout the row-softmax needs with no relayout.
    # (If a bundle dump ever shows the XLU reduce as the binding slot, switch
    #  to energy.reshape(TB*Lp, H) @ v^T on the otherwise-idle MXU.)
    scores = jnp.sum(energy * v_ref[...], axis=-1)                  # (TB, Lp)

    if Lp != L:  # mask padded source positions before the softmax
        col = jax.lax.broadcasted_iota(jnp.int32, (TB, Lp), 1)
        scores = jnp.where(col < L, scores, -1e30)

    # Row-wise numerically-stable softmax over the (padded) source length.
    m = jnp.max(scores, axis=-1, keepdims=True)
    e = jnp.exp(scores - m)
    probs = e / jnp.sum(e, axis=-1, keepdims=True)                  # (TB, Lp)

    # Lane-dense store: (TB, Lp) -> (8, TB*Lp/8) slab, unmasked vst writeback.
    o_ref[...] = probs.reshape(o_ref.shape).astype(o_ref.dtype)


def attention(s, enc_output, w_attn, w_v, *, batch_block=None,
              param_dtype=None, enc_buffers=2):
    """Pallas forward of the PyTorch Attention module.

    s:          (B, dec_hid)                      float32
    enc_output: (B, L, 2*enc_hid)                 float32
    w_attn:     (dec_hid, dec_hid + 2*enc_hid)    nn.Linear weight (no bias)
    w_v:        (1, dec_hid)                      nn.Linear weight (no bias)
    param_dtype: optional compute dtype for the streamed operands (e.g.
                 jnp.bfloat16 on v6e/v7x); accumulation stays f32.
    enc_buffers: pipeline depth for the enc stream (3 can help on v5e).
    returns:    (B, L) softmax over the source length (float32).
    """
    B, H = s.shape
    _, L, E2 = enc_output.shape
    assert w_attn.shape == (H, H + E2)
    assert w_v.shape[-1] == H

    # Split the concat-Linear. torch.cat((s, enc_output), dim=2) puts the s
    # features first, so the first H input columns of w_attn multiply s.
    # Transpose to input-major so the kernel computes plain x @ w.
    w_s = jnp.asarray(w_attn[:, :H]).T              # (H,  H)
    w_e = jnp.asarray(w_attn[:, H:]).T              # (E2, H)
    v_row = jnp.asarray(w_v).reshape(1, H).astype(jnp.float32)

    if param_dtype is not None:
        s = s.astype(param_dtype)
        enc_output = enc_output.astype(param_dtype)
        w_s = w_s.astype(param_dtype)
        w_e = w_e.astype(param_dtype)

    in_bytes = jnp.dtype(s.dtype).itemsize

    # Pad L to a sublane multiple so the in-kernel reshape is free.
    Lp = 8 * pl.cdiv(L, 8)

    if batch_block is None:
        TB = _auto_batch_tile(B, Lp, E2, H, in_bytes, DATA_VMEM_BUDGET)
    else:
        TB = max(8, (int(batch_block) // 8) * 8)
    Bp = TB * pl.cdiv(B, TB)

    if Bp != B or Lp != L:
        s = jnp.pad(s, ((0, Bp - B), (0, 0)))
        enc_output = jnp.pad(enc_output, ((0, Bp - B), (0, Lp - L), (0, 0)))

    # Lane-dense 2-D view of the encoder outputs (free row-major reshape).
    enc2d = enc_output.reshape(Bp * Lp, E2)

    grid = (Bp // TB,)
    n_out_cols = (TB * Lp) // 8          # lane width of the output slab

    enc_spec_kwargs = {}
    if enc_buffers != 2:
        enc_spec_kwargs["pipeline_mode"] = pl.Buffered(enc_buffers)

    kernel = functools.partial(_attention_kernel, batch_block=TB,
                               src_len=L, src_len_padded=Lp)

    out = pl.pallas_call(
        kernel,
        out_shape=jax.ShapeDtypeStruct((grid[0] * 8, n_out_cols), jnp.float32),
        grid=grid,
        in_specs=[
            pl.BlockSpec((TB, H), lambda b: (b, 0)),                 # s tile
            pl.BlockSpec((TB * Lp, E2), lambda b: (b, 0),            # enc rows
                         **enc_spec_kwargs),
            pl.BlockSpec((H, H), lambda b: (0, 0)),                  # W_s
            pl.BlockSpec((E2, H), lambda b: (0, 0)),                 # W_e
            pl.BlockSpec((1, H), lambda b: (0, 0)),                  # v
        ],
        out_specs=pl.BlockSpec((8, n_out_cols), lambda b: (b, 0)),   # lane-dense
        compiler_params=pltpu.CompilerParams(
            dimension_semantics=("parallel",),        # megacore / 2-TC sharding
            vmem_limit_bytes=VMEM_LIMIT_BYTES),
    )(s, enc2d, w_s, w_e, v_row)

    # Free row-major reshape back to (Bp, Lp), then drop the padding.
    return out.reshape(Bp, Lp)[:B, :L]


if __name__ == "__main__":
    key = jax.random.PRNGKey(0)
    k1, k2, k3, k4 = jax.random.split(key, 4)

    # Small shapes consistent with the module: batch=16, src_len=8,
    # enc_hid=16 (so enc features = 32), dec_hid=32.
    B, L, ENC_HID, DEC_HID = 16, 8, 16, 32
    E2 = 2 * ENC_HID

    s = jax.random.normal(k1, (B, DEC_HID), dtype=jnp.float32)
    enc_output = jax.random.normal(k2, (B, L, E2), dtype=jnp.float32)
    w_attn = 0.1 * jax.random.normal(k3, (DEC_HID, DEC_HID + E2), dtype=jnp.float32)
    w_v = 0.1 * jax.random.normal(k4, (1, DEC_HID), dtype=jnp.float32)

    def reference(s_, enc_, w_attn_, w_v_):
        Bq, Lq, _ = enc_.shape
        s_rep = jnp.broadcast_to(s_[:, None, :], (Bq, Lq, s_.shape[-1]))
        cat = jnp.concatenate([s_rep, enc_], axis=-1)
        energy = jnp.tanh(jnp.einsum("ble,he->blh", cat, w_attn_))
        scores = jnp.einsum("blh,oh->blo", energy, w_v_)[..., 0]
        return jax.nn.softmax(scores, axis=1)

    # 1) f32, aligned shapes.
    out = jax.block_until_ready(attention(s, enc_output, w_attn, w_v))
    ref = reference(s, enc_output, w_attn, w_v)
    assert out.shape == (B, L)
    assert jnp.allclose(out, ref, atol=1e-3, rtol=1e-3), \
        float(jnp.max(jnp.abs(out - ref)))

    # 2) ragged shapes: exercises batch padding, source-length padding + mask.
    B2, L2 = 10, 5
    s2 = jax.random.normal(k1, (B2, DEC_HID), dtype=jnp.float32)
    enc2 = jax.random.normal(k2, (B2, L2, E2), dtype=jnp.float32)
    out2 = jax.block_until_ready(attention(s2, enc2, w_attn, w_v))
    ref2 = reference(s2, enc2, w_attn, w_v)
    assert out2.shape == (B2, L2)
    assert jnp.allclose(out2, ref2, atol=1e-3, rtol=1e-3), \
        float(jnp.max(jnp.abs(out2 - ref2)))

    # 3) bf16 streamed operands (v6e/v7x memory-bound path), f32 accumulation.
    B3 = 32
    s3 = jax.random.normal(k3, (B3, DEC_HID), dtype=jnp.float32)
    enc3 = jax.random.normal(k4, (B3, L, E2), dtype=jnp.float32)
    out3 = jax.block_until_ready(
        attention(s3, enc3, w_attn, w_v, param_dtype=jnp.bfloat16))
    ref3 = reference(s3, enc3, w_attn, w_v)
    assert out3.shape == (B3, L)
    assert jnp.allclose(out3, ref3, atol=2e-2, rtol=2e-2), \
        float(jnp.max(jnp.abs(out3 - ref3)))

    print("KERNEL_OK")
</pallas_src>

<mosaic_0001>
module attributes {stable_mosaic.version = 11 : i64} {
  func.func @_attention_kernel(%arg0: i32, %arg1: memref<8x32xf32, #tpu.memory_space<vmem>>, %arg2: memref<64x32xf32, #tpu.memory_space<vmem>>, %arg3: memref<32x32xf32, #tpu.memory_space<vmem>>, %arg4: memref<32x32xf32, #tpu.memory_space<vmem>>, %arg5: memref<1x32xf32, #tpu.memory_space<vmem>>, %arg6: memref<8x8xf32, #tpu.memory_space<vmem>>) attributes {dimension_semantics = [#tpu.dimension_semantics<parallel>], iteration_bounds = array<i64: 2>, scalar_prefetch = 0 : i64, scratch_operands = 0 : i64, tpu.core_type = #tpu.core_type<tc>, window_params = [{transform_indices = @transform_0, window_bounds = array<i64: 8, 32>}, {transform_indices = @transform_1, window_bounds = array<i64: 64, 32>}, {pipeline_mode = #tpu.pipeline_mode<synchronous>, transform_indices = @transform_2, window_bounds = array<i64: 32, 32>}, {pipeline_mode = #tpu.pipeline_mode<synchronous>, transform_indices = @transform_3, window_bounds = array<i64: 32, 32>}, {pipeline_mode = #tpu.pipeline_mode<synchronous>, transform_indices = @transform_4, window_bounds = array<i64: 1, 32>}, {transform_indices = @transform_5, window_bounds = array<i64: 8, 8>}]} {
    %c0 = arith.constant 0 : index
    %c0_0 = arith.constant 0 : index
    %0 = vector.load %arg1[%c0, %c0_0] : memref<8x32xf32, #tpu.memory_space<vmem>>, vector<8x32xf32>
    %c0_1 = arith.constant 0 : index
    %c0_2 = arith.constant 0 : index
    %1 = vector.load %arg3[%c0_1, %c0_2] : memref<32x32xf32, #tpu.memory_space<vmem>>, vector<32x32xf32>
    %cst = arith.constant dense<0.000000e+00> : vector<8x32xf32>
    %2 = tpu.matmul %0, %1, %cst {dimension_numbers = #tpu.dot_dimension_numbers<[1], [0], [0], [1], [0, 0, 1, 1], [], []>} : vector<8x32xf32>, vector<32x32xf32>, vector<8x32xf32> -> vector<8x32xf32>
    %c0_3 = arith.constant 0 : index
    %c0_4 = arith.constant 0 : index
    %3 = vector.load %arg2[%c0_3, %c0_4] : memref<64x32xf32, #tpu.memory_space<vmem>>, vector<64x32xf32>
    %c0_5 = arith.constant 0 : index
    %c0_6 = arith.constant 0 : index
    %4 = vector.load %arg4[%c0_5, %c0_6] : memref<32x32xf32, #tpu.memory_space<vmem>>, vector<32x32xf32>
    %cst_7 = arith.constant dense<0.000000e+00> : vector<64x32xf32>
    %5 = tpu.matmul %3, %4, %cst_7 {dimension_numbers = #tpu.dot_dimension_numbers<[1], [0], [0], [1], [0, 0, 1, 1], [], []>} : vector<64x32xf32>, vector<32x32xf32>, vector<64x32xf32> -> vector<64x32xf32>
    %6 = vector.shape_cast %5 : vector<64x32xf32> to vector<8x8x32xf32>
    %7 = vector.shape_cast %2 : vector<8x32xf32> to vector<8x1x32xf32>
    %8 = vector.broadcast %7 : vector<8x1x32xf32> to vector<8x8x32xf32>
    %9 = arith.addf %6, %8 : vector<8x8x32xf32>
    %10 = math.tanh %9 : vector<8x8x32xf32>
    %c0_8 = arith.constant 0 : index
    %c0_9 = arith.constant 0 : index
    %11 = vector.load %arg5[%c0_8, %c0_9] : memref<1x32xf32, #tpu.memory_space<vmem>>, vector<1x32xf32>
    %12 = vector.shape_cast %11 : vector<1x32xf32> to vector<1x1x32xf32>
    %13 = vector.broadcast %12 : vector<1x1x32xf32> to vector<8x8x32xf32>
    %14 = arith.mulf %10, %13 : vector<8x8x32xf32>
    %cst_10 = arith.constant dense<0.000000e+00> : vector<8x8xf32>
    %15 = vector.multi_reduction <add>, %14, %cst_10 [2] : vector<8x8x32xf32> to vector<8x8xf32>
    %cst_11 = arith.constant dense<0xFF800000> : vector<8xf32>
    %16 = vector.multi_reduction <maximumf>, %15, %cst_11 [1] : vector<8x8xf32> to vector<8xf32>
    %17 = vector.shape_cast %16 : vector<8xf32> to vector<8x1xf32>
    %18 = vector.broadcast %17 : vector<8x1xf32> to vector<8x8xf32>
    %19 = arith.subf %15, %18 : vector<8x8xf32>
    %20 = math.exp %19 : vector<8x8xf32>
    %cst_12 = arith.constant dense<0.000000e+00> : vector<8xf32>
    %21 = vector.multi_reduction <add>, %20, %cst_12 [1] : vector<8x8xf32> to vector<8xf32>
    %22 = vector.shape_cast %21 : vector<8xf32> to vector<8x1xf32>
    %23 = vector.broadcast %22 : vector<8x1xf32> to vector<8x8xf32>
    %24 = arith.divf %20, %23 : vector<8x8xf32>
    %c0_13 = arith.constant 0 : index
    %c0_14 = arith.constant 0 : index
    %25 = vector.load %arg6[%c0_13, %c0_14] : memref<8x8xf32, #tpu.memory_space<vmem>>, vector<8x8xf32>
    tpu.vector_store %arg6[%c0_13, %c0_14], %24 {strides = array<i32>} : memref<8x8xf32, #tpu.memory_space<vmem>>, vector<8x8xf32>,
    return
  }
  func.func @transform_0(%arg0: i32) -> (i32, i32) {
    %c0_i32 = arith.constant 0 : i32
    %c0_i32_0 = arith.constant 0 : i32
    return %arg0, %c0_i32 : i32, i32
  }
  func.func @transform_1(%arg0: i32) -> (i32, i32) {
    %c0_i32 = arith.constant 0 : i32
    %c0_i32_0 = arith.constant 0 : i32
    return %arg0, %c0_i32 : i32, i32
  }
  func.func @transform_2(%arg0: i32) -> (i32, i32) {
    %c0_i32 = arith.constant 0 : i32
    %c0_i32_0 = arith.constant 0 : i32
    %c0_i32_1 = arith.constant 0 : i32
    return %c0_i32, %c0_i32_0 : i32, i32
  }
  func.func @transform_3(%arg0: i32) -> (i32, i32) {
    %c0_i32 = arith.constant 0 : i32
    %c0_i32_0 = arith.constant 0 : i32
    %c0_i32_1 = arith.constant 0 : i32
    return %c0_i32, %c0_i32_0 : i32, i32
  }
  func.func @transform_4(%arg0: i32) -> (i32, i32) {
    %c0_i32 = arith.constant 0 : i32
    %c0_i32_0 = arith.constant 0 : i32
    %c0_i32_1 = arith.constant 0 : i32
    return %c0_i32, %c0_i32_0 : i32, i32
  }
  func.func @transform_5(%arg0: i32) -> (i32, i32) {
    %c0_i32 = arith.constant 0 : i32
    %c0_i32_0 = arith.constant 0 : i32
    return %arg0, %c0_i32 : i32, i32
  }
}

</mosaic_0001>

<llo_original>
// kernel: tpu_custom_call.1
$region0: #{tpu_custom_call.1}
  #allocation0 [shape = 'u32[]', space=smem, size = 0x4, offset = 0x4, fixed_abs, tag = 'smem constant byte address 0x4 - core index']
  #allocation1 [shape = 'u32[72,128]{1,0:T(1,128)}', space=vmem, size = 0x9000, scoped, tag = 'internal scratch']
  %s0 = inlined_call_operand.vmem [shape: f32[16,32], index: 0, kind: input, shape index: {}]
  %s1 = inlined_call_operand.vmem [shape: f32[128,32], index: 1, kind: input, shape index: {}]
  %s2 = inlined_call_operand.vmem [shape: f32[32,32], index: 2, kind: input, shape index: {}]
  %s3 = inlined_call_operand.vmem [shape: f32[32,32], index: 3, kind: input, shape index: {}]
  %s4 = inlined_call_operand.vmem [shape: f32[1,32], index: 4, kind: input, shape index: {}]
  %s5 = inlined_call_operand.vmem [shape: f32[16,8], index: 5, kind: output, shape index: {}]
  %s6 = sld [smem:[#allocation0]]
  $region53: #{tpu_custom_call.1} parent=0
    _
  %s8 = ssub.s32 1, %s6
  %s9 = scalar_select 0, %s8, %s6
  loop: start=0, step=1, limit=4
  $region2: #{tpu_custom_call.1} parent=0 // loop_pre_header
    _
  $region3: #{tpu_custom_call.1} parent=0 // loop_header
    %s11 = sphi 0, %s15
    %p12 = scmp.ge.s32.totalorder %s11, 4
    %s21 = sphi 0, %s23
    %s24 = sphi 0, %s21
    %s25 = sphi 0, %s24
    %s41 = sphi 0, %s25
    %s47 = sphi 0, %s49
    %s50 = sphi 0, %s47
    %s51 = sphi 0, %s50
    %s67 = sphi 0, %s51
    %s71 = sphi 0, %s71
    %s73 = sphi 0, %s71
    %s74 = sphi 0, %s73
    %s88 = sphi 0, %s74
    %s92 = sphi 0, %s92
    %s94 = sphi 0, %s92
    %s95 = sphi 0, %s94
    %s109 = sphi 0, %s95
    %s113 = sphi 0, %s113
    %s115 = sphi 0, %s113
    %s116 = sphi 0, %s115
    %s130 = sphi 0, %s116
    %s136 = sphi 0, %s138
    %s139 = sphi 0, %s136
    %s140 = sphi 0, %s139
    %s156 = sphi 0, %s140
  $region4: #{tpu_custom_call.1} parent=0 // loop_header_branch
    %14 = sbr.rel (%p12) target = $region8
  $region5: #{tpu_custom_call.1} parent=0 // loop_body
    %s16 = ssub.s32 %s11, 1
    %s17 = ssub.s32 %s11, 2
    %s18 = sadd.s32 %s11, 1
    %s19 = ssub.s32 %s11, %s18
    %p20 = scmp.eq.s32.totalorder %s19, 0
    %s22 = sadd.s32 %s21, 1
    %s23 = scalar_select %p20, %s21, %s22
    %p26 = pneg %p20
    %p27 = scmp.eq.s32.totalorder %s11, 1
    %p28 = por %p26, %p27
    %p29 = scmp.ne.s32.totalorder %s21, %s24
    %p30 = scmp.eq.s32.totalorder %s11, 0
    %p31 = por %p29, %p30
    %p32 = scmp.ne.s32.totalorder %s21, %s24
    %p33 = scmp.eq.s32.totalorder %s16, 1
    %p34 = por %p32, %p33
    %p35 = scmp.ne.s32.totalorder %s24, %s25
    %p36 = scmp.eq.s32.totalorder %s16, 0
    %p37 = por %p35, %p36
    %p38 = scmp.ne.s32.totalorder %s24, %s25
    %p39 = scmp.eq.s32.totalorder %s17, 1
    %p40 = por %p38, %p39
    %p42 = scmp.ne.s32.totalorder %s25, %s41
    %p43 = scmp.eq.s32.totalorder %s17, 0
    %p44 = por %p42, %p43
    %s45 = ssub.s32 %s11, %s18
    %p46 = scmp.eq.s32.totalorder %s45, 0
    %s48 = sadd.s32 %s47, 1
    %s49 = scalar_select %p46, %s47, %s48
    %p52 = pneg %p46
    %p53 = scmp.eq.s32.totalorder %s11, 1
    %p54 = por %p52, %p53
    %p55 = scmp.ne.s32.totalorder %s47, %s50
    %p56 = scmp.eq.s32.totalorder %s11, 0
    %p57 = por %p55, %p56
    %p58 = scmp.ne.s32.totalorder %s47, %s50
    %p59 = scmp.eq.s32.totalorder %s16, 1
    %p60 = por %p58, %p59
    %p61 = scmp.ne.s32.totalorder %s50, %s51
    %p62 = scmp.eq.s32.totalorder %s16, 0
    %p63 = por %p61, %p62
    %p64 = scmp.ne.s32.totalorder %s50, %s51
    %p65 = scmp.eq.s32.totalorder %s17, 1
    %p66 = por %p64, %p65
    %p68 = scmp.ne.s32.totalorder %s51, %s67
    %p69 = scmp.eq.s32.totalorder %s17, 0
    %p70 = por %p68, %p69
    %s72 = sadd.s32 %s71, 1
    %p75 = scmp.eq.s32.totalorder %s11, 1
    %p76 = scmp.ne.s32.totalorder %s71, %s73
    %p77 = scmp.eq.s32.totalorder %s11, 0
    %p78 = por %p76, %p77
    %p79 = scmp.ne.s32.totalorder %s71, %s73
    %p80 = scmp.eq.s32.totalorder %s16, 1
    %p81 = por %p79, %p80
    %p82 = scmp.ne.s32.totalorder %s73, %s74
    %p83 = scmp.eq.s32.totalorder %s16, 0
    %p84 = por %p82, %p83
    %p85 = scmp.ne.s32.totalorder %s73, %s74
    %p86 = scmp.eq.s32.totalorder %s17, 1
    %p87 = por %p85, %p86
    %p89 = scmp.ne.s32.totalorder %s74, %s88
    %p90 = scmp.eq.s32.totalorder %s17, 0
    %p91 = por %p89, %p90
    %s93 = sadd.s32 %s92, 1
    %p96 = scmp.eq.s32.totalorder %s11, 1
    %p97 = scmp.ne.s32.totalorder %s92, %s94
    %p98 = scmp.eq.s32.totalorder %s11, 0
    %p99 = por %p97, %p98
    %p100 = scmp.ne.s32.totalorder %s92, %s94
    %p101 = scmp.eq.s32.totalorder %s16, 1
    %p102 = por %p100, %p101
    %p103 = scmp.ne.s32.totalorder %s94, %s95
    %p104 = scmp.eq.s32.totalorder %s16, 0
    %p105 = por %p103, %p104
    %p106 = scmp.ne.s32.totalorder %s94, %s95
    %p107 = scmp.eq.s32.totalorder %s17, 1
    %p108 = por %p106, %p107
    %p110 = scmp.ne.s32.totalorder %s95, %s109
    %p111 = scmp.eq.s32.totalorder %s17, 0
    %p112 = por %p110, %p111
    %s114 = sadd.s32 %s113, 1
    %p117 = scmp.eq.s32.totalorder %s11, 1
    %p118 = scmp.ne.s32.totalorder %s113, %s115
    %p119 = scmp.eq.s32.totalorder %s11, 0
    %p120 = por %p118, %p119
    %p121 = scmp.ne.s32.totalorder %s113, %s115
    %p122 = scmp.eq.s32.totalorder %s16, 1
    %p123 = por %p121, %p122
    %p124 = scmp.ne.s32.totalorder %s115, %s116
    %p125 = scmp.eq.s32.totalorder %s16, 0
    %p126 = por %p124, %p125
    %p127 = scmp.ne.s32.totalorder %s115, %s116
    %p128 = scmp.eq.s32.totalorder %s17, 1
    %p129 = por %p127, %p128
    %p131 = scmp.ne.s32.totalorder %s116, %s130
    %p132 = scmp.eq.s32.totalorder %s17, 0
    %p133 = por %p131, %p132
    %s134 = ssub.s32 %s11, %s18
    %p135 = scmp.eq.s32.totalorder %s134, 0
    %s137 = sadd.s32 %s136, 1
    %s138 = scalar_select %p135, %s136, %s137
    %p141 = pneg %p135
    %p142 = scmp.eq.s32.totalorder %s11, 1
    %p143 = por %p141, %p142
    %p144 = scmp.ne.s32.totalorder %s136, %s139
    %p145 = scmp.eq.s32.totalorder %s11, 0
    %p146 = por %p144, %p145
    %p147 = scmp.ne.s32.totalorder %s136, %s139
    %p148 = scmp.eq.s32.totalorder %s16, 1
    %p149 = por %p147, %p148
    %p150 = scmp.ne.s32.totalorder %s139, %s140
    %p151 = scmp.eq.s32.totalorder %s16, 0
    %p152 = por %p150, %p151
    %p153 = scmp.ne.s32.totalorder %s139, %s140
    %p154 = scmp.eq.s32.totalorder %s17, 1
    %p155 = por %p153, %p154
    %p157 = scmp.ne.s32.totalorder %s140, %s156
    %p158 = scmp.eq.s32.totalorder %s17, 0
    %p159 = por %p157, %p158
    %p160 = scmp.le.s32.totalorder 1, %s11
    %p161 = scmp.lt.s32.totalorder %s11, 3
    %p162 = pnand %p160, %p161
    %p163 = pneg %p162
    // Predicated region
    $region9: #{tpu_custom_call.1} parent=5 // pred_check
      _
    $region10: #{tpu_custom_call.1} parent=5 // pred_check_branch
      %165 = sbr.rel (%p162) target = $region12
    $region11: #{tpu_custom_call.1} parent=5 // pred_region
      %s166 = ssub.s32 %s11, 1
      // Predicated region
      $region13: #{tpu_custom_call.1} parent=11 // pred_check
        %p167 = pneg %p84
      $region14: #{tpu_custom_call.1} parent=11 // pred_check_branch
        %169 = sbr.rel (%p167) target = $region16
      $region15: #{tpu_custom_call.1} parent=11 // pred_region
        _
      $region16: #{tpu_custom_call.1} parent=11 // pred_fallthru
        _
      // Predicated region
      $region17: #{tpu_custom_call.1} parent=11 // pred_check
        %p170 = pneg %p105
      $region18: #{tpu_custom_call.1} parent=11 // pred_check_branch
        %172 = sbr.rel (%p170) target = $region20
      $region19: #{tpu_custom_call.1} parent=11 // pred_region
        _
      $region20: #{tpu_custom_call.1} parent=11 // pred_fallthru
        _
      // Predicated region
      $region21: #{tpu_custom_call.1} parent=11 // pred_check
        %p173 = pneg %p126
      $region22: #{tpu_custom_call.1} parent=11 // pred_check_branch
        %175 = sbr.rel (%p173) target = $region24
      $region23: #{tpu_custom_call.1} parent=11 // pred_region
        _
      $region24: #{tpu_custom_call.1} parent=11 // pred_fallthru
        _
    $region12: #{tpu_custom_call.1} parent=5 // pred_fallthru
      _
    %p176 = scmp.lt.s32.totalorder %s11, 2
    // Predicated region
    $region25: #{tpu_custom_call.1} parent=5 // pred_check
      %p177 = pneg %p176
    $region26: #{tpu_custom_call.1} parent=5 // pred_check_branch
      %179 = sbr.rel (%p177) target = $region28
    $region27: #{tpu_custom_call.1} parent=5 // pred_region
      // Predicated region
      $region29: #{tpu_custom_call.1} parent=27 // pred_check
        %p180 = pneg %p31
      $region30: #{tpu_custom_call.1} parent=27 // pred_check_branch
        %182 = sbr.rel (%p180) target = $region32
      $region31: #{tpu_custom_call.1} parent=27 // pred_region
        %p183 = scmp.lt.s32.totalorder %s11, 1
        %s184 = scalar_select %p183, %s11, 1
        %s185 = smul.addr %s184, 8
        %s186 = scalar_lea.vmem %s0, %s185
      $region32: #{tpu_custom_call.1} parent=27 // pred_fallthru
        _
      // Predicated region
      $region33: #{tpu_custom_call.1} parent=27 // pred_check
        %p187 = pneg %p57
      $region34: #{tpu_custom_call.1} parent=27 // pred_check_branch
        %189 = sbr.rel (%p187) target = $region36
      $region35: #{tpu_custom_call.1} parent=27 // pred_region
        %s190 = smul.u32 8, %s11
        %p191 = scmp.lt.s32.totalorder %s190, 15
        %s192 = scalar_select %p191, %s190, 15
        %s193 = smul.addr %s192, 8
        %s194 = scalar_lea.vmem %s1, %s193
        %s195 = smul.u32 8, %s11
      $region36: #{tpu_custom_call.1} parent=27 // pred_fallthru
        _
    $region28: #{tpu_custom_call.1} parent=5 // pred_fallthru
      _
    %p196 = scmp.le.s32.totalorder 1, %s11
    %p197 = scmp.lt.s32.totalorder %s11, 3
    %p198 = pnand %p196, %p197
    %p199 = pneg %p198
    // Predicated region
    $region37: #{tpu_custom_call.1} parent=5 // pred_check
      _
    $region38: #{tpu_custom_call.1} parent=5 // pred_check_branch
      %201 = sbr.rel (%p198) target = $region40
    $region39: #{tpu_custom_call.1} parent=5 // pred_region
      %s202 = ssub.s32 %s11, 1
      %p203 = scmp.lt.s32.totalorder %s16, 1
      %s204 = scalar_select %p203, %s16, 1
      %s205 = smul.addr %s204, 8
      %s206 = scalar_lea.vmem %s0, %s205
      %p207 = pneg %p37
      %p208 = pneg %p34
      %s209 = smul.u32 8, %s16
      %p210 = scmp.lt.s32.totalorder %s209, 15
      %s211 = scalar_select %p210, %s209, 15
      %s212 = smul.addr %s211, 8
      %s213 = scalar_lea.vmem %s1, %s212
      %p214 = pneg %p63
      %p215 = pneg %p60
      %p216 = pneg %p84
      %p217 = pneg %p81
      %p218 = pneg %p105
      %p219 = pneg %p102
      %p220 = pneg %p126
      %p221 = pneg %p123
      %p222 = pneg %p152
      %p223 = pneg %p149
      %p224 = scmp.lt.s32.totalorder %s16, 1
      %s225 = scalar_select %p224, %s16, 1
      %s226 = smul.addr %s225, 8
      %s227 = scalar_lea.vmem %s5, %s226
      %p228 = scmp.lt.s32.totalorder %s16, 1
      %s229 = scalar_select %p228, %s16, 1
      %s230 = smul.addr %s229, 8
      %s231 = scalar_lea.vmem %s0, %s230
      %s232 = smul.u32 8, %s16
      %p233 = scmp.lt.s32.totalorder %s232, 15
      %s234 = scalar_select %p233, %s232, 15
      %s235 = smul.addr %s234, 8
      %s236 = scalar_lea.vmem %s1, %s235
      %s237 = smul.u32 8, %s16
      %p238 = scmp.lt.s32.totalorder %s16, 1
      %s239 = scalar_select %p238, %s16, 1
      %s240 = smul.addr %s239, 8
      %s241 = scalar_lea.vmem %s5, %s240
      %v242 = vld [vmem:[%s231] sm:$0xff]
      %v243 = vld [vmem:[%s2] sm:$0xff]
      %v244 = vld [vmem:[%s2 + $0x8] sm:$0xff]
      %v245 = vld [vmem:[%s2 + $0x10] sm:$0xff]
      %v246 = vld [vmem:[%s2 + $0x18] sm:$0xff]
      %vm247 = vcmask 261120
      %v249 = vsel %vm247, %v242, 0
      %251 = vmatpush.msra.mxu0 0.0
      %252 = vmatpush.msra.mxu0 0.0
      %253 = vmatpush.msra.mxu0 0.0
      %254 = vmatpush.msra.mxu0 0.0
      %255 = vmatpush.msra.mxu0 0.0
      %256 = vmatpush.msra.mxu0 0.0
      %257 = vmatpush.msra.mxu0 0.0
      %258 = vmatpush.msra.mxu0 0.0
      %259 = vmatpush.msra.mxu0 0.0
      %260 = vmatpush.msra.mxu0 0.0
      %261 = vmatpush.msra.mxu0 0.0
      %262 = vmatpush.msra.mxu0 0.0
      %263 = vmatpush.msra.mxu0 %v246
      %264 = vmatpush.msra.mxu0 %v245
      %265 = vmatpush.msra.mxu0 %v244
      %266 = vmatpush.msra.mxu0 %v243
      %267 = vmatmul.f32.gmra.mxu0 %v249
      %v268 = vpop.f32.mrf.mxu0
      %v269 = vadd.f32 0.0, %v268
      %270 = vdwg.mxu0
      %v271 = vld [vmem:[%s236] sm:$0xff]
      %v272 = vld [vmem:[%s236 + $0x8] sm:$0xff]
      %v273 = vld [vmem:[%s236 + $0x10] sm:$0xff]
      %v274 = vld [vmem:[%s236 + $0x18] sm:$0xff]
      %v275 = vld [vmem:[%s236 + $0x20] sm:$0xff]
      %v276 = vld [vmem:[%s236 + $0x28] sm:$0xff]
      %v277 = vld [vmem:[%s236 + $0x30] sm:$0xff]
      %v278 = vld [vmem:[%s236 + $0x38] sm:$0xff]
      %v279 = vld [vmem:[%s3] sm:$0xff]
      %v280 = vld [vmem:[%s3 + $0x8] sm:$0xff]
      %v281 = vld [vmem:[%s3 + $0x10] sm:$0xff]
      %v282 = vld [vmem:[%s3 + $0x18] sm:$0xff]
      %v284 = vsel %vm247, %v271, 0
      %v287 = vsel %vm247, %v272, 0
      %v290 = vsel %vm247, %v273, 0
      %v293 = vsel %vm247, %v274, 0
      %v296 = vsel %vm247, %v275, 0
      %v299 = vsel %vm247, %v276, 0
      %v302 = vsel %vm247, %v277, 0
      %v305 = vsel %vm247, %v278, 0
      %307 = vmatpush.msra.mxu0 0.0
      %308 = vmatpush.msra.mxu0 0.0
      %309 = vmatpush.msra.mxu0 0.0
      %310 = vmatpush.msra.mxu0 0.0
      %311 = vmatpush.msra.mxu0 0.0
      %312 = vmatpush.msra.mxu0 0.0
      %313 = vmatpush.msra.mxu0 0.0
      %314 = vmatpush.msra.mxu0 0.0
      %315 = vmatpush.msra.mxu0 0.0
      %316 = vmatpush.msra.mxu0 0.0
      %317 = vmatpush.msra.mxu0 0.0
      %318 = vmatpush.msra.mxu0 0.0
      %319 = vmatpush.msra.mxu0 %v282
      %320 = vmatpush.msra.mxu0 %v281
      %321 = vmatpush.msra.mxu0 %v280
      %322 = vmatpush.msra.mxu0 %v279
      %323 = vmatmul.f32.gmra.mxu0 %v284
      %v324 = vpop.f32.mrf.mxu0
      %v325 = vadd.f32 0.0, %v324
      %326 = vmatmul.f32.gmra.mxu0 %v287
      %v327 = vpop.f32.mrf.mxu0
      %v328 = vadd.f32 0.0, %v327
      %329 = vmatmul.f32.gmra.mxu0 %v290
      %v330 = vpop.f32.mrf.mxu0
      %v331 = vadd.f32 0.0, %v330
      %332 = vmatmul.f32.gmra.mxu0 %v293
      %v333 = vpop.f32.mrf.mxu0
      %v334 = vadd.f32 0.0, %v333
      %335 = vmatmul.f32.gmra.mxu0 %v296
      %v336 = vpop.f32.mrf.mxu0
      %v337 = vadd.f32 0.0, %v336
      %338 = vmatmul.f32.gmra.mxu0 %v299
      %v339 = vpop.f32.mrf.mxu0
      %v340 = vadd.f32 0.0, %v339
      %341 = vmatmul.f32.gmra.mxu0 %v302
      %v342 = vpop.f32.mrf.mxu0
      %v343 = vadd.f32 0.0, %v342
      %344 = vmatmul.f32.gmra.mxu0 %v305
      %v345 = vpop.f32.mrf.mxu0
      %v346 = vadd.f32 0.0, %v345
      %347 = vdwg.mxu0
      %v349 = vrot.slane %v269, 1
      %v350 = vrot.slane %v269, 2
      %v351 = vrot.slane %v269, 3
      %v352 = vrot.slane %v269, 4
      %v353 = vrot.slane %v269, 5
      %v354 = vrot.slane %v269, 6
      %v355 = vrot.slane %v269, 7
      %v356 = vperm.slane %v269, 0
      %v357 = vperm.slane %v349, 0
      %v358 = vperm.slane %v350, 0
      %v359 = vperm.slane %v351, 0
      %v360 = vperm.slane %v352, 0
      %v361 = vperm.slane %v353, 0
      %v362 = vperm.slane %v354, 0
      %v363 = vperm.slane %v355, 0
      %v372 = vadd.f32 %v325, %v356
      %v373 = vadd.f32 %v328, %v357
      %v374 = vadd.f32 %v331, %v358
      %v375 = vadd.f32 %v334, %v359
      %v376 = vadd.f32 %v337, %v360
      %v377 = vadd.f32 %v340, %v361
      %v378 = vadd.f32 %v343, %v362
      %v379 = vadd.f32 %v346, %v363
      %v380 = vtanh.pop %v372
      %v381 = vtanh.pop %v373
      %v382 = vtanh.pop %v374
      %v383 = vtanh.pop %v375
      %v384 = vtanh.pop %v376
      %v385 = vtanh.pop %v377
      %v386 = vtanh.pop %v378
      %v387 = vtanh.pop %v379
      %v388 = vld [vmem:[%s4] sm:$0x1]
      %v390 = vperm.slane %v388, 0
      %v392 = vmul.f32 %v380, %v390
      %v393 = vmul.f32 %v381, %v390
      %v394 = vmul.f32 %v382, %v390
      %v395 = vmul.f32 %v383, %v390
      %v396 = vmul.f32 %v384, %v390
      %v397 = vmul.f32 %v385, %v390
      %v398 = vmul.f32 %v386, %v390
      %v399 = vmul.f32 %v387, %v390
      %v400 = vsel %vm247, %v392, 0.0
      %401 = vadd.xlane.f32.xlu0 %v400
      %v402 = vpop.xlane.xlu0 %401
      %v403 = vsel %vm247, %v393, 0.0
      %404 = vadd.xlane.f32.xlu0 %v403
      %v405 = vpop.xlane.xlu0 %404
      %v406 = vsel %vm247, %v394, 0.0
      %407 = vadd.xlane.f32.xlu0 %v406
      %v408 = vpop.xlane.xlu0 %407
      %v409 = vsel %vm247, %v395, 0.0
      %410 = vadd.xlane.f32.xlu0 %v409
      %v411 = vpop.xlane.xlu0 %410
      %v412 = vsel %vm247, %v396, 0.0
      %413 = vadd.xlane.f32.xlu0 %v412
      %v414 = vpop.xlane.xlu0 %413
      %v415 = vsel %vm247, %v397, 0.0
      %416 = vadd.xlane.f32.xlu0 %v415
      %v417 = vpop.xlane.xlu0 %416
      %v418 = vsel %vm247, %v398, 0.0
      %419 = vadd.xlane.f32.xlu0 %v418
      %v420 = vpop.xlane.xlu0 %419
      %v421 = vsel %vm247, %v399, 0.0
      %422 = vadd.xlane.f32.xlu0 %v421
      %v423 = vpop.xlane.xlu0 %422
      %v432 = vlaneseq
      %v433 = vand.u32 %v432, 127
      %v434 = vperm.slane %v402, %v433
      %v435 = vperm.slane %v405, %v433
      %v436 = vperm.slane %v408, %v433
      %v437 = vperm.slane %v411, %v433
      %v438 = vperm.slane %v414, %v433
      %v439 = vperm.slane %v417, %v433
      %v440 = vperm.slane %v420, %v433
      %v441 = vperm.slane %v423, %v433
      %vm442 = vcmask 1041409
      %v443 = vsel %vm442, %v435, %v434
      %vm444 = vcmask 1042434
      %v445 = vsel %vm444, %v436, %v443
      %vm446 = vcmask 1043459
      %v447 = vsel %vm446, %v437, %v445
      %vm448 = vcmask 1044484
      %v449 = vsel %vm448, %v438, %v447
      %vm450 = vcmask 1045509
      %v451 = vsel %vm450, %v439, %v449
      %vm452 = vcmask 1046534
      %v453 = vsel %vm452, %v440, %v451
      %vm454 = vcmask 1047559
      %v455 = vsel %vm454, %v441, %v453
      %vm457 = vcmask 64512
      %v458 = vsel %vm457, %v455, -inf
      %459 = vmax.xlane.f32.xlu0 %v458
      %v460 = vpop.xlane.xlu0 %459
      %v462 = vperm.slane %v460, 0
      %v463 = vperm.slane %v460, 1
      %v464 = vperm.slane %v460, 2
      %v465 = vperm.slane %v460, 3
      %v466 = vperm.slane %v460, 4
      %v467 = vperm.slane %v460, 5
      %v468 = vperm.slane %v460, 6
      %v469 = vperm.slane %v460, 7
      %v478 = vsub.f32 %v402, %v462
      %v479 = vsub.f32 %v405, %v463
      %v480 = vsub.f32 %v408, %v464
      %v481 = vsub.f32 %v411, %v465
      %v482 = vsub.f32 %v414, %v466
      %v483 = vsub.f32 %v417, %v467
      %v484 = vsub.f32 %v420, %v468
      %v485 = vsub.f32 %v423, %v469
      %v486 = vmul.f32 %v478, 1.442695
      %v487 = vpow.pop %v486
      %v488 = vmul.f32 %v479, 1.442695
      %v489 = vpow.pop %v488
      %v490 = vmul.f32 %v480, 1.442695
      %v491 = vpow.pop %v490
      %v492 = vmul.f32 %v481, 1.442695
      %v493 = vpow.pop %v492
      %v494 = vmul.f32 %v482, 1.442695
      %v495 = vpow.pop %v494
      %v496 = vmul.f32 %v483, 1.442695
      %v497 = vpow.pop %v496
      %v498 = vmul.f32 %v484, 1.442695
      %v499 = vpow.pop %v498
      %v500 = vmul.f32 %v485, 1.442695
      %v501 = vpow.pop %v500
      %510 = vset.pattern.permute.xlu0 0
      %511 = vperm.xlu0 %510, %v487
      %v512 = vpop.permute.xlu0 %511
      %513 = vset.pattern.permute.xlu0 0
      %514 = vperm.xlu0 %513, %v489
      %v515 = vpop.permute.xlu0 %514
      %516 = vset.pattern.permute.xlu0 0
      %517 = vperm.xlu0 %516, %v491
      %v518 = vpop.permute.xlu0 %517
      %519 = vset.pattern.permute.xlu0 0
      %520 = vperm.xlu0 %519, %v493
      %v521 = vpop.permute.xlu0 %520
      %522 = vset.pattern.permute.xlu0 0
      %523 = vperm.xlu0 %522, %v495
      %v524 = vpop.permute.xlu0 %523
      %525 = vset.pattern.permute.xlu0 0
      %526 = vperm.xlu0 %525, %v497
      %v527 = vpop.permute.xlu0 %526
      %528 = vset.pattern.permute.xlu0 0
      %529 = vperm.xlu0 %528, %v499
      %v530 = vpop.permute.xlu0 %529
      %531 = vset.pattern.permute.xlu0 0
      %532 = vperm.xlu0 %531, %v501
      %v533 = vpop.permute.xlu0 %532
      %v534 = vperm.slane %v512, %v433
      %v535 = vperm.slane %v515, %v433
      %v536 = vperm.slane %v518, %v433
      %v537 = vperm.slane %v521, %v433
      %v538 = vperm.slane %v524, %v433
      %v539 = vperm.slane %v527, %v433
      %v540 = vperm.slane %v530, %v433
      %v541 = vperm.slane %v533, %v433
      %v542 = vsel %vm442, %v535, %v534
      %v543 = vsel %vm444, %v536, %v542
      %v544 = vsel %vm446, %v537, %v543
      %v545 = vsel %vm448, %v538, %v544
      %v546 = vsel %vm450, %v539, %v545
      %v547 = vsel %vm452, %v540, %v546
      %v548 = vsel %vm454, %v541, %v547
      %v550 = vsel %vm457, %v548, 0.0
      %551 = vadd.xlane.f32.xlu0 %v550
      %v552 = vpop.xlane.xlu0 %551
      %v554 = vperm.slane %v552, 0
      %v555 = vperm.slane %v552, 1
      %v556 = vperm.slane %v552, 2
      %v557 = vperm.slane %v552, 3
      %v558 = vperm.slane %v552, 4
      %v559 = vperm.slane %v552, 5
      %v560 = vperm.slane %v552, 6
      %v561 = vperm.slane %v552, 7
      %v570 = vrcp.pop %v554
      %v571 = vmul.f32 %v554, %v570
      %v572 = vsub.f32 1.0, %v571
      %v573 = vmul.f32 %v570, %v572
      %v574 = vadd.f32 %v570, %v573
      %vm575 = vweird.f32 %v554
      %vm576 = vweird.f32 %v570
      %vm577 = vmor %vm575, %vm576
      %v578 = vsel %vm577, %v570, %v574
      %v579 = vand.u32 2147483647, %v554
      %vm580 = vcmp.eq.f32.partialorder %v579, 8.507059e+37
      %v581 = vand.u32 %v554, 2147483648
      %v582 = vor.u32 1.1754944e-38, %v581
      %v583 = vsel %vm580, %v582, %v578
      %v584 = vmul.f32 %v487, %v583
      %v585 = vrcp.pop %v555
      %v586 = vmul.f32 %v555, %v585
      %v587 = vsub.f32 1.0, %v586
      %v588 = vmul.f32 %v585, %v587
      %v589 = vadd.f32 %v585, %v588
      %vm590 = vweird.f32 %v555
      %vm591 = vweird.f32 %v585
      %vm592 = vmor %vm590, %vm591
      %v593 = vsel %vm592, %v585, %v589
      %v594 = vand.u32 2147483647, %v555
      %vm595 = vcmp.eq.f32.partialorder %v594, 8.507059e+37
      %v596 = vand.u32 %v555, 2147483648
      %v597 = vor.u32 1.1754944e-38, %v596
      %v598 = vsel %vm595, %v597, %v593
      %v599 = vmul.f32 %v489, %v598
      %v600 = vrcp.pop %v556
      %v601 = vmul.f32 %v556, %v600
      %v602 = vsub.f32 1.0, %v601
      %v603 = vmul.f32 %v600, %v602
      %v604 = vadd.f32 %v600, %v603
      %vm605 = vweird.f32 %v556
      %vm606 = vweird.f32 %v600
      %vm607 = vmor %vm605, %vm606
      %v608 = vsel %vm607, %v600, %v604
      %v609 = vand.u32 2147483647, %v556
      %vm610 = vcmp.eq.f32.partialorder %v609, 8.507059e+37
      %v611 = vand.u32 %v556, 2147483648
      %v612 = vor.u32 1.1754944e-38, %v611
      %v613 = vsel %vm610, %v612, %v608
      %v614 = vmul.f32 %v491, %v613
      %v615 = vrcp.pop %v557
      %v616 = vmul.f32 %v557, %v615
      %v617 = vsub.f32 1.0, %v616
      %v618 = vmul.f32 %v615, %v617
      %v619 = vadd.f32 %v615, %v618
      %vm620 = vweird.f32 %v557
      %vm621 = vweird.f32 %v615
      %vm622 = vmor %vm620, %vm621
      %v623 = vsel %vm622, %v615, %v619
      %v624 = vand.u32 2147483647, %v557
      %vm625 = vcmp.eq.f32.partialorder %v624, 8.507059e+37
      %v626 = vand.u32 %v557, 2147483648
      %v627 = vor.u32 1.1754944e-38, %v626
      %v628 = vsel %vm625, %v627, %v623
      %v629 = vmul.f32 %v493, %v628
      %v630 = vrcp.pop %v558
      %v631 = vmul.f32 %v558, %v630
      %v632 = vsub.f32 1.0, %v631
      %v633 = vmul.f32 %v630, %v632
      %v634 = vadd.f32 %v630, %v633
      %vm635 = vweird.f32 %v558
      %vm636 = vweird.f32 %v630
      %vm637 = vmor %vm635, %vm636
      %v638 = vsel %vm637, %v630, %v634
      %v639 = vand.u32 2147483647, %v558
      %vm640 = vcmp.eq.f32.partialorder %v639, 8.507059e+37
      %v641 = vand.u32 %v558, 2147483648
      %v642 = vor.u32 1.1754944e-38, %v641
      %v643 = vsel %vm640, %v642, %v638
      %v644 = vmul.f32 %v495, %v643
      %v645 = vrcp.pop %v559
      %v646 = vmul.f32 %v559, %v645
      %v647 = vsub.f32 1.0, %v646
      %v648 = vmul.f32 %v645, %v647
      %v649 = vadd.f32 %v645, %v648
      %vm650 = vweird.f32 %v559
      %vm651 = vweird.f32 %v645
      %vm652 = vmor %vm650, %vm651
      %v653 = vsel %vm652, %v645, %v649
      %v654 = vand.u32 2147483647, %v559
      %vm655 = vcmp.eq.f32.partialorder %v654, 8.507059e+37
      %v656 = vand.u32 %v559, 2147483648
      %v657 = vor.u32 1.1754944e-38, %v656
      %v658 = vsel %vm655, %v657, %v653
      %v659 = vmul.f32 %v497, %v658
      %v660 = vrcp.pop %v560
      %v661 = vmul.f32 %v560, %v660
      %v662 = vsub.f32 1.0, %v661
      %v663 = vmul.f32 %v660, %v662
      %v664 = vadd.f32 %v660, %v663
      %vm665 = vweird.f32 %v560
      %vm666 = vweird.f32 %v660
      %vm667 = vmor %vm665, %vm666
      %v668 = vsel %vm667, %v660, %v664
      %v669 = vand.u32 2147483647, %v560
      %vm670 = vcmp.eq.f32.partialorder %v669, 8.507059e+37
      %v671 = vand.u32 %v560, 2147483648
      %v672 = vor.u32 1.1754944e-38, %v671
      %v673 = vsel %vm670, %v672, %v668
      %v674 = vmul.f32 %v499, %v673
      %v675 = vrcp.pop %v561
      %v676 = vmul.f32 %v561, %v675
      %v677 = vsub.f32 1.0, %v676
      %v678 = vmul.f32 %v675, %v677
      %v679 = vadd.f32 %v675, %v678
      %vm680 = vweird.f32 %v561
      %vm681 = vweird.f32 %v675
      %vm682 = vmor %vm680, %vm681
      %v683 = vsel %vm682, %v675, %v679
      %v684 = vand.u32 2147483647, %v561
      %vm685 = vcmp.eq.f32.partialorder %v684, 8.507059e+37
      %v686 = vand.u32 %v561, 2147483648
      %v687 = vor.u32 1.1754944e-38, %v686
      %v688 = vsel %vm685, %v687, %v683
      %v689 = vmul.f32 %v501, %v688
      %698 = vset.pattern.permute.xlu0 0
      %699 = vperm.xlu0 %698, %v584
      %v700 = vpop.permute.xlu0 %699
      %701 = vset.pattern.permute.xlu0 0
      %702 = vperm.xlu0 %701, %v599
      %v703 = vpop.permute.xlu0 %702
      %704 = vset.pattern.permute.xlu0 0
      %705 = vperm.xlu0 %704, %v614
      %v706 = vpop.permute.xlu0 %705
      %707 = vset.pattern.permute.xlu0 0
      %708 = vperm.xlu0 %707, %v629
      %v709 = vpop.permute.xlu0 %708
      %710 = vset.pattern.permute.xlu0 0
      %711 = vperm.xlu0 %710, %v644
      %v712 = vpop.permute.xlu0 %711
      %713 = vset.pattern.permute.xlu0 0
      %714 = vperm.xlu0 %713, %v659
      %v715 = vpop.permute.xlu0 %714
      %716 = vset.pattern.permute.xlu0 0
      %717 = vperm.xlu0 %716, %v674
      %v718 = vpop.permute.xlu0 %717
      %719 = vset.pattern.permute.xlu0 0
      %720 = vperm.xlu0 %719, %v689
      %v721 = vpop.permute.xlu0 %720
      %v722 = vperm.slane %v700, %v433
      %v723 = vperm.slane %v703, %v433
      %v724 = vperm.slane %v706, %v433
      %v725 = vperm.slane %v709, %v433
      %v726 = vperm.slane %v712, %v433
      %v727 = vperm.slane %v715, %v433
      %v728 = vperm.slane %v718, %v433
      %v729 = vperm.slane %v721, %v433
      %v730 = vsel %vm442, %v723, %v722
      %v731 = vsel %vm444, %v724, %v730
      %v732 = vsel %vm446, %v725, %v731
      %v733 = vsel %vm448, %v726, %v732
      %v734 = vsel %vm450, %v727, %v733
      %v735 = vsel %vm452, %v728, %v734
      %v736 = vsel %vm454, %v729, %v735
      %738 = vst.msk [vmem:[%s241] sm:$0xff] %vm457, %v736
      %p739 = scmp.lt.s32.totalorder %s16, 1
      %s740 = scalar_select %p739, %s16, 1
      %s741 = smul.addr %s740, 8
      %s742 = scalar_lea.vmem %s5, %s741
      // Predicated region
      $region41: #{tpu_custom_call.1} parent=39 // pred_check
        %p743 = pneg %p149
      $region42: #{tpu_custom_call.1} parent=39 // pred_check_branch
        %745 = sbr.rel (%p743) target = $region44
      $region43: #{tpu_custom_call.1} parent=39 // pred_region
        _
      $region44: #{tpu_custom_call.1} parent=39 // pred_fallthru
        _
    $region40: #{tpu_custom_call.1} parent=5 // pred_fallthru
      _
    %p746 = scmp.le.s32.totalorder 2, %s11
    // Predicated region
    $region45: #{tpu_custom_call.1} parent=5 // pred_check
      %p747 = pneg %p746
    $region46: #{tpu_custom_call.1} parent=5 // pred_check_branch
      %749 = sbr.rel (%p747) target = $region48
    $region47: #{tpu_custom_call.1} parent=5 // pred_region
      %s750 = ssub.s32 %s11, 2
      // Predicated region
      $region49: #{tpu_custom_call.1} parent=47 // pred_check
        %p751 = pneg %p155
      $region50: #{tpu_custom_call.1} parent=47 // pred_check_branch
        %753 = sbr.rel (%p751) target = $region52
      $region51: #{tpu_custom_call.1} parent=47 // pred_region
        %p754 = scmp.lt.s32.totalorder %s17, 1
        %s755 = scalar_select %p754, %s17, 1
        %s756 = smul.addr %s755, 8
        %s757 = scalar_lea.vmem %s5, %s756
      $region52: #{tpu_custom_call.1} parent=47 // pred_fallthru
        _
    $region48: #{tpu_custom_call.1} parent=5 // pred_fallthru
      _
  $region6: #{tpu_custom_call.1} parent=0 // loop_footer
    %s15 = sadd.s32 1, %s11
  $region7: #{tpu_custom_call.1} parent=0 // loop_footer_branch
    %10 = sbr.rel target = $region3
  $region8: #{tpu_custom_call.1} parent=0 // loop_exit
    _

</llo_original>
